<compile_context>
chip_gen: v5e
topology: v5e:2x2
jax: 0.10.0
libtpu: 0.0.40
codegen_flags: <defaults>
</compile_context>

<pallas_src>
import jax
import jax.numpy as jnp
from jax.experimental import pallas as pl
from jax.experimental.pallas import tpu as pltpu


def tomnet_kernel(x_ref, state_ref, wih_ref, whh_ref, bias_ref,
                  whd_ref, wd2_ref, out_ref):
    TB = x_ref.shape[0]
    Bp = state_ref.shape[0] // 3          # padded batch (multiple of 8)
    H = state_ref.shape[1]
    T = TB // Bp
    H1, O = wd2_ref.shape
    OUT_W = out_ref.shape[1]

    # --- Packed bias slab: rows = b_lstm | b_head | b_d1 | b_d2 (lane offset 0)
    b_lstm = bias_ref[0:1, :4 * H]         # (1, 4H)
    b_head = bias_ref[1:2, :2 * H]         # (1, 2H)
    b_d1 = bias_ref[2:3, :H1]              # (1, H1)
    b_d2 = bias_ref[3:4, :O]               # (1, O)

    # --- Hoisted input projection: single matmul for all timesteps ----------
    # x_ref is time-major flat (T*Bp, I) bf16; wih bf16; accumulate in f32.
    xw = (jnp.dot(x_ref[...], wih_ref[...], preferred_element_type=jnp.float32)
          + b_lstm)                                        # (T*Bp, 4H) f32

    whh = whh_ref[...]                                     # (H, 4H) bf16, resident

    # --- Initial state (sublane-aligned row slices of the state slab) -------
    h = state_ref[0 * Bp:1 * Bp, :]                        # (Bp, H) f32
    c = state_ref[1 * Bp:2 * Bp, :]                        # (Bp, H) f32
    eps = state_ref[2 * Bp:3 * Bp, :]                      # (Bp, H) f32

    # --- LSTM recurrence, fully unrolled (T static & small) -----------------
    # TODO(synk): if T grows beyond a few dozen, switch to
    # lax.fori_loop(..., unroll=2..4) with (h, c) carried to bound vreg live ranges.
    for t in range(T):                                     # torch gate order: i, f, g, o
        gates = xw[t * Bp:(t + 1) * Bp, :] + jnp.dot(
            h.astype(whh.dtype), whh, preferred_element_type=jnp.float32)   # (Bp, 4H) f32
        # Full-vreg activations (one sigmoid + one tanh over the whole gate block).
        sig = jax.nn.sigmoid(gates)
        tnh = jnp.tanh(gates)
        i_g = sig[:, 0 * H:1 * H]
        f_g = sig[:, 1 * H:2 * H]
        o_g = sig[:, 3 * H:4 * H]
        g_g = tnh[:, 2 * H:3 * H]
        c = f_g * c + i_g * g_g
        h = o_g * jnp.tanh(c)

    # --- Fused variational head (lane slice of the head|d1 weight slab) -----
    whd = whd_ref[...]                                     # (H, 2H+H1) bf16
    head = (jnp.dot(h.astype(whd.dtype), whd[:, :2 * H],
                    preferred_element_type=jnp.float32) + b_head)           # (Bp, 2H) f32
    mu = head[:, :H]
    log_var = head[:, H:]
    std = jnp.exp(0.5 * log_var)
    z = jax.nn.softmax(mu + std * eps, axis=-1)            # (Bp, H) f32

    # --- Decoder: Linear(H0,H1) -> Tanh -> Linear(H1,O) ---------------------
    h1 = jnp.tanh(jnp.dot(z.astype(whd.dtype), whd[:, 2 * H:2 * H + H1],
                          preferred_element_type=jnp.float32) + b_d1)       # (Bp, H1)
    rec = (jnp.dot(h1.astype(wd2_ref.dtype), wd2_ref[...],
                   preferred_element_type=jnp.float32) + b_d2)              # (Bp, O)

    # --- Single lane-dense output: [ z | rec | 0-pad ] ----------------------
    pad = OUT_W - H - O
    out_ref[...] = jnp.concatenate(
        [z, rec, jnp.zeros((Bp, pad), jnp.float32)], axis=-1)


def tomnet_forward(x, params, h0, c0, eps):
    B, T, I = x.shape
    H = params["w_hh"].shape[0]
    H1 = params["w_d1"].shape[1]
    O = params["w_d2"].shape[1]

    # Pad batch to a multiple of 8 sublanes (extra rows ride free through the MXU).
    Bp = max(8, ((B + 7) // 8) * 8)
    pad_b = Bp - B
    bf = jnp.bfloat16

    # Time-major flat LSTM input so each timestep is a contiguous, 8-aligned
    # sublane slice of the hoisted projection.
    # TODO(synk): at large B*T, require time-major input from the producer to
    # avoid this extra HBM transpose pass.
    x_p = jnp.pad(x.astype(jnp.float32), ((0, pad_b), (0, 0), (0, 0)))
    x_flat = jnp.transpose(x_p, (1, 0, 2)).reshape(T * Bp, I).astype(bf)

    def pad_rows(a):
        return jnp.pad(a.astype(jnp.float32), ((0, pad_b), (0, 0)))

    # State slab (sublane-stacked): h0 | c0 | eps  -> (3*Bp, H), one DMA.
    state = jnp.concatenate([pad_rows(h0), pad_rows(c0), pad_rows(eps)], axis=0)

    # Bias slab (sublane-stacked, lane-dense to 4H): one DMA for all 4 biases.
    W4 = 4 * H

    def pad_lanes(b):
        b = b.astype(jnp.float32).reshape(1, -1)
        return jnp.pad(b, ((0, 0), (0, W4 - b.shape[1])))

    bias_slab = jnp.concatenate([pad_lanes(params["b"]),
                                 pad_lanes(params["b_head"]),
                                 pad_lanes(params["b_d1"]),
                                 pad_lanes(params["b_d2"])], axis=0)     # (4, 4H)

    # Fused mu|log_var head weight + decoder layer-1 weight (same H rows): one DMA.
    w_hd = jnp.concatenate([params["w_head"], params["w_d1"]], axis=1).astype(bf)

    OUT_W = max(128, ((H + O + 127) // 128) * 128)

    operands = (x_flat, state,
                params["w_ih"].astype(bf), params["w_hh"].astype(bf),
                bias_slab, w_hd, params["w_d2"].astype(bf))

    vmem = pl.BlockSpec(memory_space=pltpu.MemorySpace.VMEM)

    flops = (2 * T * Bp * I * 4 * H        # hoisted input projection
             + 2 * T * Bp * H * 4 * H      # recurrent matmuls
             + 2 * Bp * H * 2 * H          # fused mu|log_var head
             + 2 * Bp * H * H1             # decoder layer 1
             + 2 * Bp * H1 * O)            # decoder layer 2
    transcendentals = (T * Bp * (2 * 4 * H + H)   # full-vreg sigmoid+tanh(gates) + tanh(c)
                       + Bp * 3 * H               # exp(0.5*log_var) + softmax exp/recip
                       + Bp * H1)                 # decoder tanh
    out_bytes = Bp * OUT_W * 4
    bytes_accessed = int(sum(int(op.size) * op.dtype.itemsize for op in operands)
                         + out_bytes)

    out = pl.pallas_call(
        tomnet_kernel,
        out_shape=jax.ShapeDtypeStruct((Bp, OUT_W), jnp.float32),
        in_specs=[vmem] * len(operands),
        out_specs=vmem,
        cost_estimate=pl.CostEstimate(flops=int(flops),
                                      transcendentals=int(transcendentals),
                                      bytes_accessed=bytes_accessed),
    )(*operands)
    # TODO(synk): for large B, add a batch grid axis with
    # dimension_semantics=("parallel",) so v7x's second TensorCore is used, and
    # tile the hoisted xw projection over T to respect v7x's 64 MiB VMEM.

    z = out[:B, :H]
    rec = out[:B, H:H + O]
    # Match PyTorch return: z.unsqueeze(0) -> (1, B, H); recovery.squeeze(0) -> (B, O)
    return z[None], rec


def init_params(key, input_size, hidden_sizes, output_size):
    """Deterministic init mirroring the module's parameter shapes (uniform +-1/sqrt(fan))."""
    H0, H1 = hidden_sizes
    ks = jax.random.split(key, 12)

    def unif(k, shape, fan):
        bound = 1.0 / float(fan) ** 0.5
        return jax.random.uniform(k, shape, jnp.float32, -bound, bound)

    w_mu, b_mu = unif(ks[4], (H0, H0), H0), unif(ks[5], (1, H0), H0)
    w_lv, b_lv = unif(ks[6], (H0, H0), H0), unif(ks[7], (1, H0), H0)

    return {
        # LSTM weights stored transposed relative to torch: (fan_in, 4H)
        "w_ih": unif(ks[0], (input_size, 4 * H0), H0),
        "w_hh": unif(ks[1], (H0, 4 * H0), H0),
        # Combined bias = b_ih + b_hh (two independent torch-style draws, summed).
        "b": unif(ks[2], (1, 4 * H0), H0) + unif(ks[3], (1, 4 * H0), H0),
        # Fused mu | log_var head (lane-concatenated): (H0, 2*H0) / (1, 2*H0)
        "w_head": jnp.concatenate([w_mu, w_lv], axis=1),
        "b_head": jnp.concatenate([b_mu, b_lv], axis=1),
        "w_d1": unif(ks[8], (H0, H1), H0),
        "b_d1": unif(ks[9], (1, H1), H0),
        "w_d2": unif(ks[10], (H1, output_size), H1),
        "b_d2": unif(ks[11], (1, output_size), H1),
    }


if __name__ == "__main__":
    key = jax.random.PRNGKey(0)
    B, T, I = 2, 8, 16
    hidden_size = [32, 16]
    output_size = 8

    k_x, k_h, k_c, k_e, k_p = jax.random.split(key, 5)
    x = jax.random.normal(k_x, (B, T, I), jnp.float32)
    # torch.randn(num_layers*num_directions, B, H) with 1 layer/direction -> (B, H)
    h0 = jax.random.normal(k_h, (B, hidden_size[0]), jnp.float32)
    c0 = jax.random.normal(k_c, (B, hidden_size[0]), jnp.float32)
    # eps = torch.randn_like(std), supplied from host RNG
    eps = jax.random.normal(k_e, (B, hidden_size[0]), jnp.float32)

    params = init_params(k_p, I, hidden_size, output_size)

    z, recovery = tomnet_forward(x, params, h0, c0, eps)
    jax.block_until_ready((z, recovery))

    assert z.shape == (1, B, hidden_size[0]), z.shape
    assert recovery.shape == (B, output_size), recovery.shape
    assert bool(jnp.all(jnp.isfinite(z))) and bool(jnp.all(jnp.isfinite(recovery)))
    # softmax rows must sum to 1
    assert bool(jnp.allclose(jnp.sum(z, axis=-1), 1.0, atol=1e-5))

    print("KERNEL_OK")
</pallas_src>

<mosaic_0001>
module attributes {stable_mosaic.version = 11 : i64} {
  func.func @tomnet_kernel(%arg0: memref<64x16xbf16, #tpu.memory_space<vmem>>, %arg1: memref<24x32xf32, #tpu.memory_space<vmem>>, %arg2: memref<16x128xbf16, #tpu.memory_space<vmem>>, %arg3: memref<32x128xbf16, #tpu.memory_space<vmem>>, %arg4: memref<4x128xf32, #tpu.memory_space<vmem>>, %arg5: memref<32x80xbf16, #tpu.memory_space<vmem>>, %arg6: memref<16x8xbf16, #tpu.memory_space<vmem>>, %arg7: memref<8x128xf32, #tpu.memory_space<vmem>>) attributes {dimension_semantics = [], scalar_prefetch = 0 : i64, scratch_operands = 0 : i64, tpu.core_type = #tpu.core_type<tc>} {
    %c0 = arith.constant 0 : index
    %c0_0 = arith.constant 0 : index
    %0 = vector.load %arg4[%c0, %c0_0] : memref<4x128xf32, #tpu.memory_space<vmem>>, vector<1x128xf32>
    %c1 = arith.constant 1 : index
    %c0_1 = arith.constant 0 : index
    %1 = vector.load %arg4[%c1, %c0_1] : memref<4x128xf32, #tpu.memory_space<vmem>>, vector<1x64xf32>
    %c2 = arith.constant 2 : index
    %c0_2 = arith.constant 0 : index
    %2 = vector.load %arg4[%c2, %c0_2] : memref<4x128xf32, #tpu.memory_space<vmem>>, vector<1x16xf32>
    %c3 = arith.constant 3 : index
    %c0_3 = arith.constant 0 : index
    %3 = vector.load %arg4[%c3, %c0_3] : memref<4x128xf32, #tpu.memory_space<vmem>>, vector<1x8xf32>
    %c0_4 = arith.constant 0 : index
    %c0_5 = arith.constant 0 : index
    %4 = vector.load %arg0[%c0_4, %c0_5] : memref<64x16xbf16, #tpu.memory_space<vmem>>, vector<64x16xbf16>
    %c0_6 = arith.constant 0 : index
    %c0_7 = arith.constant 0 : index
    %5 = vector.load %arg2[%c0_6, %c0_7] : memref<16x128xbf16, #tpu.memory_space<vmem>>, vector<16x128xbf16>
    %cst = arith.constant dense<0.000000e+00> : vector<64x128xf32>
    %6 = tpu.matmul %4, %5, %cst {dimension_numbers = #tpu.dot_dimension_numbers<[1], [0], [0], [1], [0, 0, 1, 1], [], []>} : vector<64x16xbf16>, vector<16x128xbf16>, vector<64x128xf32> -> vector<64x128xf32>
    %7 = vector.broadcast %0 : vector<1x128xf32> to vector<64x128xf32>
    %8 = arith.addf %6, %7 : vector<64x128xf32>
    %c0_8 = arith.constant 0 : index
    %c0_9 = arith.constant 0 : index
    %9 = vector.load %arg3[%c0_8, %c0_9] : memref<32x128xbf16, #tpu.memory_space<vmem>>, vector<32x128xbf16>
    %c0_10 = arith.constant 0 : index
    %c0_11 = arith.constant 0 : index
    %10 = vector.load %arg1[%c0_10, %c0_11] : memref<24x32xf32, #tpu.memory_space<vmem>>, vector<8x32xf32>
    %c8 = arith.constant 8 : index
    %c0_12 = arith.constant 0 : index
    %11 = vector.load %arg1[%c8, %c0_12] : memref<24x32xf32, #tpu.memory_space<vmem>>, vector<8x32xf32>
    %c16 = arith.constant 16 : index
    %c0_13 = arith.constant 0 : index
    %12 = vector.load %arg1[%c16, %c0_13] : memref<24x32xf32, #tpu.memory_space<vmem>>, vector<8x32xf32>
    %13 = vector.extract_strided_slice %8 {offsets = [0, 0], sizes = [8, 128], strides = [1, 1]} : vector<64x128xf32> to vector<8x128xf32>
    %14 = arith.truncf %10 : vector<8x32xf32> to vector<8x32xbf16>
    %cst_14 = arith.constant dense<0.000000e+00> : vector<8x128xf32>
    %15 = tpu.matmul %14, %9, %cst_14 {dimension_numbers = #tpu.dot_dimension_numbers<[1], [0], [0], [1], [0, 0, 1, 1], [], []>} : vector<8x32xbf16>, vector<32x128xbf16>, vector<8x128xf32> -> vector<8x128xf32>
    %16 = arith.addf %13, %15 : vector<8x128xf32>
    %17 = arith.negf %16 : vector<8x128xf32>
    %18 = math.exp %17 : vector<8x128xf32>
    %cst_15 = arith.constant 1.000000e+00 : f32
    %19 = vector.broadcast %cst_15 : f32 to vector<8x128xf32>
    %20 = arith.addf %19, %18 : vector<8x128xf32>
    %21 = arith.divf %19, %20 : vector<8x128xf32>
    %22 = math.tanh %16 : vector<8x128xf32>
    %23 = vector.extract_strided_slice %21 {offsets = [0, 0], sizes = [8, 32], strides = [1, 1]} : vector<8x128xf32> to vector<8x32xf32>
    %24 = vector.extract_strided_slice %21 {offsets = [0, 32], sizes = [8, 32], strides = [1, 1]} : vector<8x128xf32> to vector<8x32xf32>
    %25 = vector.extract_strided_slice %21 {offsets = [0, 96], sizes = [8, 32], strides = [1, 1]} : vector<8x128xf32> to vector<8x32xf32>
    %26 = vector.extract_strided_slice %22 {offsets = [0, 64], sizes = [8, 32], strides = [1, 1]} : vector<8x128xf32> to vector<8x32xf32>
    %27 = arith.mulf %24, %11 : vector<8x32xf32>
    %28 = arith.mulf %23, %26 : vector<8x32xf32>
    %29 = arith.addf %27, %28 : vector<8x32xf32>
    %30 = math.tanh %29 : vector<8x32xf32>
    %31 = arith.mulf %25, %30 : vector<8x32xf32>
    %32 = vector.extract_strided_slice %8 {offsets = [8, 0], sizes = [8, 128], strides = [1, 1]} : vector<64x128xf32> to vector<8x128xf32>
    %33 = arith.truncf %31 : vector<8x32xf32> to vector<8x32xbf16>
    %cst_16 = arith.constant dense<0.000000e+00> : vector<8x128xf32>
    %34 = tpu.matmul %33, %9, %cst_16 {dimension_numbers = #tpu.dot_dimension_numbers<[1], [0], [0], [1], [0, 0, 1, 1], [], []>} : vector<8x32xbf16>, vector<32x128xbf16>, vector<8x128xf32> -> vector<8x128xf32>
    %35 = arith.addf %32, %34 : vector<8x128xf32>
    %36 = arith.negf %35 : vector<8x128xf32>
    %37 = math.exp %36 : vector<8x128xf32>
    %cst_17 = arith.constant 1.000000e+00 : f32
    %38 = vector.broadcast %cst_17 : f32 to vector<8x128xf32>
    %39 = arith.addf %38, %37 : vector<8x128xf32>
    %40 = arith.divf %38, %39 : vector<8x128xf32>
    %41 = math.tanh %35 : vector<8x128xf32>
    %42 = vector.extract_strided_slice %40 {offsets = [0, 0], sizes = [8, 32], strides = [1, 1]} : vector<8x128xf32> to vector<8x32xf32>
    %43 = vector.extract_strided_slice %40 {offsets = [0, 32], sizes = [8, 32], strides = [1, 1]} : vector<8x128xf32> to vector<8x32xf32>
    %44 = vector.extract_strided_slice %40 {offsets = [0, 96], sizes = [8, 32], strides = [1, 1]} : vector<8x128xf32> to vector<8x32xf32>
    %45 = vector.extract_strided_slice %41 {offsets = [0, 64], sizes = [8, 32], strides = [1, 1]} : vector<8x128xf32> to vector<8x32xf32>
    %46 = arith.mulf %43, %29 : vector<8x32xf32>
    %47 = arith.mulf %42, %45 : vector<8x32xf32>
    %48 = arith.addf %46, %47 : vector<8x32xf32>
    %49 = math.tanh %48 : vector<8x32xf32>
    %50 = arith.mulf %44, %49 : vector<8x32xf32>
    %51 = vector.extract_strided_slice %8 {offsets = [16, 0], sizes = [8, 128], strides = [1, 1]} : vector<64x128xf32> to vector<8x128xf32>
    %52 = arith.truncf %50 : vector<8x32xf32> to vector<8x32xbf16>
    %cst_18 = arith.constant dense<0.000000e+00> : vector<8x128xf32>
    %53 = tpu.matmul %52, %9, %cst_18 {dimension_numbers = #tpu.dot_dimension_numbers<[1], [0], [0], [1], [0, 0, 1, 1], [], []>} : vector<8x32xbf16>, vector<32x128xbf16>, vector<8x128xf32> -> vector<8x128xf32>
    %54 = arith.addf %51, %53 : vector<8x128xf32>
    %55 = arith.negf %54 : vector<8x128xf32>
    %56 = math.exp %55 : vector<8x128xf32>
    %cst_19 = arith.constant 1.000000e+00 : f32
    %57 = vector.broadcast %cst_19 : f32 to vector<8x128xf32>
    %58 = arith.addf %57, %56 : vector<8x128xf32>
    %59 = arith.divf %57, %58 : vector<8x128xf32>
    %60 = math.tanh %54 : vector<8x128xf32>
    %61 = vector.extract_strided_slice %59 {offsets = [0, 0], sizes = [8, 32], strides = [1, 1]} : vector<8x128xf32> to vector<8x32xf32>
    %62 = vector.extract_strided_slice %59 {offsets = [0, 32], sizes = [8, 32], strides = [1, 1]} : vector<8x128xf32> to vector<8x32xf32>
    %63 = vector.extract_strided_slice %59 {offsets = [0, 96], sizes = [8, 32], strides = [1, 1]} : vector<8x128xf32> to vector<8x32xf32>
    %64 = vector.extract_strided_slice %60 {offsets = [0, 64], sizes = [8, 32], strides = [1, 1]} : vector<8x128xf32> to vector<8x32xf32>
    %65 = arith.mulf %62, %48 : vector<8x32xf32>
    %66 = arith.mulf %61, %64 : vector<8x32xf32>
    %67 = arith.addf %65, %66 : vector<8x32xf32>
    %68 = math.tanh %67 : vector<8x32xf32>
    %69 = arith.mulf %63, %68 : vector<8x32xf32>
    %70 = vector.extract_strided_slice %8 {offsets = [24, 0], sizes = [8, 128], strides = [1, 1]} : vector<64x128xf32> to vector<8x128xf32>
    %71 = arith.truncf %69 : vector<8x32xf32> to vector<8x32xbf16>
    %cst_20 = arith.constant dense<0.000000e+00> : vector<8x128xf32>
    %72 = tpu.matmul %71, %9, %cst_20 {dimension_numbers = #tpu.dot_dimension_numbers<[1], [0], [0], [1], [0, 0, 1, 1], [], []>} : vector<8x32xbf16>, vector<32x128xbf16>, vector<8x128xf32> -> vector<8x128xf32>
    %73 = arith.addf %70, %72 : vector<8x128xf32>
    %74 = arith.negf %73 : vector<8x128xf32>
    %75 = math.exp %74 : vector<8x128xf32>
    %cst_21 = arith.constant 1.000000e+00 : f32
    %76 = vector.broadcast %cst_21 : f32 to vector<8x128xf32>
    %77 = arith.addf %76, %75 : vector<8x128xf32>
    %78 = arith.divf %76, %77 : vector<8x128xf32>
    %79 = math.tanh %73 : vector<8x128xf32>
    %80 = vector.extract_strided_slice %78 {offsets = [0, 0], sizes = [8, 32], strides = [1, 1]} : vector<8x128xf32> to vector<8x32xf32>
    %81 = vector.extract_strided_slice %78 {offsets = [0, 32], sizes = [8, 32], strides = [1, 1]} : vector<8x128xf32> to vector<8x32xf32>
    %82 = vector.extract_strided_slice %78 {offsets = [0, 96], sizes = [8, 32], strides = [1, 1]} : vector<8x128xf32> to vector<8x32xf32>
    %83 = vector.extract_strided_slice %79 {offsets = [0, 64], sizes = [8, 32], strides = [1, 1]} : vector<8x128xf32> to vector<8x32xf32>
    %84 = arith.mulf %81, %67 : vector<8x32xf32>
    %85 = arith.mulf %80, %83 : vector<8x32xf32>
    %86 = arith.addf %84, %85 : vector<8x32xf32>
    %87 = math.tanh %86 : vector<8x32xf32>
    %88 = arith.mulf %82, %87 : vector<8x32xf32>
    %89 = vector.extract_strided_slice %8 {offsets = [32, 0], sizes = [8, 128], strides = [1, 1]} : vector<64x128xf32> to vector<8x128xf32>
    %90 = arith.truncf %88 : vector<8x32xf32> to vector<8x32xbf16>
    %cst_22 = arith.constant dense<0.000000e+00> : vector<8x128xf32>
    %91 = tpu.matmul %90, %9, %cst_22 {dimension_numbers = #tpu.dot_dimension_numbers<[1], [0], [0], [1], [0, 0, 1, 1], [], []>} : vector<8x32xbf16>, vector<32x128xbf16>, vector<8x128xf32> -> vector<8x128xf32>
    %92 = arith.addf %89, %91 : vector<8x128xf32>
    %93 = arith.negf %92 : vector<8x128xf32>
    %94 = math.exp %93 : vector<8x128xf32>
    %cst_23 = arith.constant 1.000000e+00 : f32
    %95 = vector.broadcast %cst_23 : f32 to vector<8x128xf32>
    %96 = arith.addf %95, %94 : vector<8x128xf32>
    %97 = arith.divf %95, %96 : vector<8x128xf32>
    %98 = math.tanh %92 : vector<8x128xf32>
    %99 = vector.extract_strided_slice %97 {offsets = [0, 0], sizes = [8, 32], strides = [1, 1]} : vector<8x128xf32> to vector<8x32xf32>
    %100 = vector.extract_strided_slice %97 {offsets = [0, 32], sizes = [8, 32], strides = [1, 1]} : vector<8x128xf32> to vector<8x32xf32>
    %101 = vector.extract_strided_slice %97 {offsets = [0, 96], sizes = [8, 32], strides = [1, 1]} : vector<8x128xf32> to vector<8x32xf32>
    %102 = vector.extract_strided_slice %98 {offsets = [0, 64], sizes = [8, 32], strides = [1, 1]} : vector<8x128xf32> to vector<8x32xf32>
    %103 = arith.mulf %100, %86 : vector<8x32xf32>
    %104 = arith.mulf %99, %102 : vector<8x32xf32>
    %105 = arith.addf %103, %104 : vector<8x32xf32>
    %106 = math.tanh %105 : vector<8x32xf32>
    %107 = arith.mulf %101, %106 : vector<8x32xf32>
    %108 = vector.extract_strided_slice %8 {offsets = [40, 0], sizes = [8, 128], strides = [1, 1]} : vector<64x128xf32> to vector<8x128xf32>
    %109 = arith.truncf %107 : vector<8x32xf32> to vector<8x32xbf16>
    %cst_24 = arith.constant dense<0.000000e+00> : vector<8x128xf32>
    %110 = tpu.matmul %109, %9, %cst_24 {dimension_numbers = #tpu.dot_dimension_numbers<[1], [0], [0], [1], [0, 0, 1, 1], [], []>} : vector<8x32xbf16>, vector<32x128xbf16>, vector<8x128xf32> -> vector<8x128xf32>
    %111 = arith.addf %108, %110 : vector<8x128xf32>
    %112 = arith.negf %111 : vector<8x128xf32>
    %113 = math.exp %112 : vector<8x128xf32>
    %cst_25 = arith.constant 1.000000e+00 : f32
    %114 = vector.broadcast %cst_25 : f32 to vector<8x128xf32>
    %115 = arith.addf %114, %113 : vector<8x128xf32>
    %116 = arith.divf %114, %115 : vector<8x128xf32>
    %117 = math.tanh %111 : vector<8x128xf32>
    %118 = vector.extract_strided_slice %116 {offsets = [0, 0], sizes = [8, 32], strides = [1, 1]} : vector<8x128xf32> to vector<8x32xf32>
    %119 = vector.extract_strided_slice %116 {offsets = [0, 32], sizes = [8, 32], strides = [1, 1]} : vector<8x128xf32> to vector<8x32xf32>
    %120 = vector.extract_strided_slice %116 {offsets = [0, 96], sizes = [8, 32], strides = [1, 1]} : vector<8x128xf32> to vector<8x32xf32>
    %121 = vector.extract_strided_slice %117 {offsets = [0, 64], sizes = [8, 32], strides = [1, 1]} : vector<8x128xf32> to vector<8x32xf32>
    %122 = arith.mulf %119, %105 : vector<8x32xf32>
    %123 = arith.mulf %118, %121 : vector<8x32xf32>
    %124 = arith.addf %122, %123 : vector<8x32xf32>
    %125 = math.tanh %124 : vector<8x32xf32>
    %126 = arith.mulf %120, %125 : vector<8x32xf32>
    %127 = vector.extract_strided_slice %8 {offsets = [48, 0], sizes = [8, 128], strides = [1, 1]} : vector<64x128xf32> to vector<8x128xf32>
    %128 = arith.truncf %126 : vector<8x32xf32> to vector<8x32xbf16>
    %cst_26 = arith.constant dense<0.000000e+00> : vector<8x128xf32>
    %129 = tpu.matmul %128, %9, %cst_26 {dimension_numbers = #tpu.dot_dimension_numbers<[1], [0], [0], [1], [0, 0, 1, 1], [], []>} : vector<8x32xbf16>, vector<32x128xbf16>, vector<8x128xf32> -> vector<8x128xf32>
    %130 = arith.addf %127, %129 : vector<8x128xf32>
    %131 = arith.negf %130 : vector<8x128xf32>
    %132 = math.exp %131 : vector<8x128xf32>
    %cst_27 = arith.constant 1.000000e+00 : f32
    %133 = vector.broadcast %cst_27 : f32 to vector<8x128xf32>
    %134 = arith.addf %133, %132 : vector<8x128xf32>
    %135 = arith.divf %133, %134 : vector<8x128xf32>
    %136 = math.tanh %130 : vector<8x128xf32>
    %137 = vector.extract_strided_slice %135 {offsets = [0, 0], sizes = [8, 32], strides = [1, 1]} : vector<8x128xf32> to vector<8x32xf32>
    %138 = vector.extract_strided_slice %135 {offsets = [0, 32], sizes = [8, 32], strides = [1, 1]} : vector<8x128xf32> to vector<8x32xf32>
    %139 = vector.extract_strided_slice %135 {offsets = [0, 96], sizes = [8, 32], strides = [1, 1]} : vector<8x128xf32> to vector<8x32xf32>
    %140 = vector.extract_strided_slice %136 {offsets = [0, 64], sizes = [8, 32], strides = [1, 1]} : vector<8x128xf32> to vector<8x32xf32>
    %141 = arith.mulf %138, %124 : vector<8x32xf32>
    %142 = arith.mulf %137, %140 : vector<8x32xf32>
    %143 = arith.addf %141, %142 : vector<8x32xf32>
    %144 = math.tanh %143 : vector<8x32xf32>
    %145 = arith.mulf %139, %144 : vector<8x32xf32>
    %146 = vector.extract_strided_slice %8 {offsets = [56, 0], sizes = [8, 128], strides = [1, 1]} : vector<64x128xf32> to vector<8x128xf32>
    %147 = arith.truncf %145 : vector<8x32xf32> to vector<8x32xbf16>
    %cst_28 = arith.constant dense<0.000000e+00> : vector<8x128xf32>
    %148 = tpu.matmul %147, %9, %cst_28 {dimension_numbers = #tpu.dot_dimension_numbers<[1], [0], [0], [1], [0, 0, 1, 1], [], []>} : vector<8x32xbf16>, vector<32x128xbf16>, vector<8x128xf32> -> vector<8x128xf32>
    %149 = arith.addf %146, %148 : vector<8x128xf32>
    %150 = arith.negf %149 : vector<8x128xf32>
    %151 = math.exp %150 : vector<8x128xf32>
    %cst_29 = arith.constant 1.000000e+00 : f32
    %152 = vector.broadcast %cst_29 : f32 to vector<8x128xf32>
    %153 = arith.addf %152, %151 : vector<8x128xf32>
    %154 = arith.divf %152, %153 : vector<8x128xf32>
    %155 = math.tanh %149 : vector<8x128xf32>
    %156 = vector.extract_strided_slice %154 {offsets = [0, 0], sizes = [8, 32], strides = [1, 1]} : vector<8x128xf32> to vector<8x32xf32>
    %157 = vector.extract_strided_slice %154 {offsets = [0, 32], sizes = [8, 32], strides = [1, 1]} : vector<8x128xf32> to vector<8x32xf32>
    %158 = vector.extract_strided_slice %154 {offsets = [0, 96], sizes = [8, 32], strides = [1, 1]} : vector<8x128xf32> to vector<8x32xf32>
    %159 = vector.extract_strided_slice %155 {offsets = [0, 64], sizes = [8, 32], strides = [1, 1]} : vector<8x128xf32> to vector<8x32xf32>
    %160 = arith.mulf %157, %143 : vector<8x32xf32>
    %161 = arith.mulf %156, %159 : vector<8x32xf32>
    %162 = arith.addf %160, %161 : vector<8x32xf32>
    %163 = math.tanh %162 : vector<8x32xf32>
    %164 = arith.mulf %158, %163 : vector<8x32xf32>
    %c0_30 = arith.constant 0 : index
    %c0_31 = arith.constant 0 : index
    %165 = vector.load %arg5[%c0_30, %c0_31] : memref<32x80xbf16, #tpu.memory_space<vmem>>, vector<32x80xbf16>
    %166 = arith.truncf %164 : vector<8x32xf32> to vector<8x32xbf16>
    %167 = vector.extract_strided_slice %165 {offsets = [0, 0], sizes = [32, 64], strides = [1, 1]} : vector<32x80xbf16> to vector<32x64xbf16>
    %cst_32 = arith.constant dense<0.000000e+00> : vector<8x64xf32>
    %168 = tpu.matmul %166, %167, %cst_32 {dimension_numbers = #tpu.dot_dimension_numbers<[1], [0], [0], [1], [0, 0, 1, 1], [], []>} : vector<8x32xbf16>, vector<32x64xbf16>, vector<8x64xf32> -> vector<8x64xf32>
    %169 = vector.broadcast %1 : vector<1x64xf32> to vector<8x64xf32>
    %170 = arith.addf %168, %169 : vector<8x64xf32>
    %171 = vector.extract_strided_slice %170 {offsets = [0, 0], sizes = [8, 32], strides = [1, 1]} : vector<8x64xf32> to vector<8x32xf32>
    %172 = vector.extract_strided_slice %170 {offsets = [0, 32], sizes = [8, 32], strides = [1, 1]} : vector<8x64xf32> to vector<8x32xf32>
    %cst_33 = arith.constant 5.000000e-01 : f32
    %173 = vector.broadcast %cst_33 : f32 to vector<8x32xf32>
    %174 = arith.mulf %173, %172 : vector<8x32xf32>
    %175 = math.exp %174 : vector<8x32xf32>
    %176 = arith.mulf %175, %12 : vector<8x32xf32>
    %177 = arith.addf %171, %176 : vector<8x32xf32>
    %cst_34 = arith.constant dense<0xFF800000> : vector<8xf32>
    %178 = vector.multi_reduction <maximumf>, %177, %cst_34 [1] : vector<8x32xf32> to vector<8xf32>
    %cst_35 = arith.constant 0xFF800000 : f32
    %179 = vector.broadcast %cst_35 : f32 to vector<8xf32>
    %180 = arith.maximumf %179, %178 : vector<8xf32>
    %181 = vector.shape_cast %180 : vector<8xf32> to vector<8x1xf32>
    %182 = vector.broadcast %181 : vector<8x1xf32> to vector<8x32xf32>
    %183 = arith.subf %177, %182 : vector<8x32xf32>
    %184 = math.exp %183 : vector<8x32xf32>
    %cst_36 = arith.constant dense<0.000000e+00> : vector<8xf32>
    %185 = vector.multi_reduction <add>, %184, %cst_36 [1] : vector<8x32xf32> to vector<8xf32>
    %186 = vector.shape_cast %185 : vector<8xf32> to vector<8x1xf32>
    %187 = vector.broadcast %186 : vector<8x1xf32> to vector<8x32xf32>
    %188 = arith.divf %184, %187 : vector<8x32xf32>
    %189 = arith.truncf %188 : vector<8x32xf32> to vector<8x32xbf16>
    %190 = vector.extract_strided_slice %165 {offsets = [0, 64], sizes = [32, 16], strides = [1, 1]} : vector<32x80xbf16> to vector<32x16xbf16>
    %cst_37 = arith.constant dense<0.000000e+00> : vector<8x16xf32>
    %191 = tpu.matmul %189, %190, %cst_37 {dimension_numbers = #tpu.dot_dimension_numbers<[1], [0], [0], [1], [0, 0, 1, 1], [], []>} : vector<8x32xbf16>, vector<32x16xbf16>, vector<8x16xf32> -> vector<8x16xf32>
    %192 = vector.broadcast %2 : vector<1x16xf32> to vector<8x16xf32>
    %193 = arith.addf %191, %192 : vector<8x16xf32>
    %194 = math.tanh %193 : vector<8x16xf32>
    %195 = arith.truncf %194 : vector<8x16xf32> to vector<8x16xbf16>
    %c0_38 = arith.constant 0 : index
    %c0_39 = arith.constant 0 : index
    %196 = vector.load %arg6[%c0_38, %c0_39] : memref<16x8xbf16, #tpu.memory_space<vmem>>, vector<16x8xbf16>
    %cst_40 = arith.constant dense<0.000000e+00> : vector<8x8xf32>
    %197 = tpu.matmul %195, %196, %cst_40 {dimension_numbers = #tpu.dot_dimension_numbers<[1], [0], [0], [1], [0, 0, 1, 1], [], []>} : vector<8x16xbf16>, vector<16x8xbf16>, vector<8x8xf32> -> vector<8x8xf32>
    %198 = vector.broadcast %3 : vector<1x8xf32> to vector<8x8xf32>
    %199 = arith.addf %197, %198 : vector<8x8xf32>
    %cst_41 = arith.constant 0.000000e+00 : f32
    %200 = vector.broadcast %cst_41 : f32 to vector<8x88xf32>
    %201 = tpu.concatenate %188, %199, %200 in 1 : vector<8x32xf32>, vector<8x8xf32>, vector<8x88xf32> -> vector<8x128xf32>
    %c0_42 = arith.constant 0 : index
    %c0_43 = arith.constant 0 : index
    %202 = vector.load %arg7[%c0_42, %c0_43] : memref<8x128xf32, #tpu.memory_space<vmem>>, vector<8x128xf32>
    tpu.vector_store %arg7[%c0_42, %c0_43], %201 {strides = array<i32>} : memref<8x128xf32, #tpu.memory_space<vmem>>, vector<8x128xf32>,
    return
  }
}

</mosaic_0001>

<llo_original>
// kernel: tpu_custom_call.1
$region0: #{tpu_custom_call.1}
  #allocation0 [shape = 'u32[]', space=smem, size = 0x4, offset = 0x4, fixed_abs, tag = 'smem constant byte address 0x4 - core index']
  #allocation1 [shape = 'u32[72,128]{1,0:T(1,128)}', space=vmem, size = 0x9000, scoped, tag = 'internal scratch']
  %s0 = inlined_call_operand.vmem [shape: bf16[64,16], index: 0, kind: input, shape index: {}]
  %s1 = inlined_call_operand.vmem [shape: f32[24,32], index: 1, kind: input, shape index: {}]
  %s2 = inlined_call_operand.hbm [shape: bf16[16,128], index: 2, kind: input, shape index: {}]
  %s3 = inlined_call_operand.vmem [shape: bf16[32,128], index: 3, kind: input, shape index: {}]
  %s4 = inlined_call_operand.hbm [shape: f32[4,128], index: 4, kind: input, shape index: {}]
  %s5 = inlined_call_operand.vmem [shape: bf16[32,80], index: 5, kind: input, shape index: {}]
  %s6 = inlined_call_operand.vmem [shape: bf16[16,8], index: 6, kind: input, shape index: {}]
  %s7 = inlined_call_operand.hbm [shape: f32[8,128], index: 7, kind: output, shape index: {}]
  %s8 = sld [smem:[#allocation0]]
  $region46: #{tpu_custom_call.1} parent=0
    _
  %s10 = ssub.s32 1, %s8
  %s11 = scalar_select 0, %s10, %s8
  $region1: #{tpu_custom_call.1} parent=0
    #allocation2 [shape = 'u8[4096]{0}', space=vmem, size = 0x1000, scoped, tag = 'input window, operand 2, single buffered']
    #allocation3 [shape = 's32[1]{0}', space=sflag, size = 0x4, scoped, tag = 'scoped memory for tpu_custom_call.1']
    #allocation4 [shape = 's32[1]{0}', space=sflag, size = 0x4, scoped, tag = 'scoped memory for tpu_custom_call.1']
    #allocation5 [shape = 'u8[2048]{0}', space=vmem, size = 0x800, scoped, tag = 'input window, operand 4, single buffered']
    #allocation6 [shape = 's32[1]{0}', space=sflag, size = 0x4, scoped, tag = 'scoped memory for tpu_custom_call.1']
    #allocation7 [shape = 'u8[4096]{0}', space=vmem, size = 0x1000, scoped, tag = 'output window, operand 0, single buffered']
    %12 = vsyncpa [#allocation3], 0
    %13 = vsyncpa [#allocation6], 0
    %14 = vsyncpa [#allocation4], 0
    // Predicated region
    $region2: #{tpu_custom_call.1} parent=1 // pred_check
      _
    $region3: #{tpu_custom_call.1} parent=1 // pred_check_branch
      %16 = sbr.rel (0) target = $region5
    $region4: #{tpu_custom_call.1} parent=1 // pred_region
      _
    $region5: #{tpu_custom_call.1} parent=1 // pred_fallthru
      _
    // Predicated region
    $region6: #{tpu_custom_call.1} parent=1 // pred_check
      _
    $region7: #{tpu_custom_call.1} parent=1 // pred_check_branch
      %18 = sbr.rel (0) target = $region9
    $region8: #{tpu_custom_call.1} parent=1 // pred_region
      _
    $region9: #{tpu_custom_call.1} parent=1 // pred_fallthru
      _
    // Predicated region
    $region10: #{tpu_custom_call.1} parent=1 // pred_check
      _
    $region11: #{tpu_custom_call.1} parent=1 // pred_check_branch
      %20 = sbr.rel (0) target = $region13
    $region12: #{tpu_custom_call.1} parent=1 // pred_region
      %22 = vsyncadd [#allocation3], 0
      %s23 = sshll.u32 %s2, 4
      %s24 = int_to_ptr.hbm [resolvable:$true] %s23
      %s25 = sshll.u32 [#allocation2], 4
      %s26 = int_to_ptr.vmem [resolvable:$true] %s25
      %31 = dma.hbm_to_vmem [thread:$0]  %s24, 128, %s26, [#allocation3], 64, 64, 4
    $region13: #{tpu_custom_call.1} parent=1 // pred_fallthru
      _
    // Predicated region
    $region14: #{tpu_custom_call.1} parent=1 // pred_check
      _
    $region15: #{tpu_custom_call.1} parent=1 // pred_check_branch
      %33 = sbr.rel (0) target = $region17
    $region16: #{tpu_custom_call.1} parent=1 // pred_region
      _
    $region17: #{tpu_custom_call.1} parent=1 // pred_fallthru
      _
    // Predicated region
    $region18: #{tpu_custom_call.1} parent=1 // pred_check
      _
    $region19: #{tpu_custom_call.1} parent=1 // pred_check_branch
      %35 = sbr.rel (0) target = $region21
    $region20: #{tpu_custom_call.1} parent=1 // pred_region
      %37 = vsyncadd [#allocation6], 0
      %s39 = sshll.u32 %s4, 4
      %s40 = int_to_ptr.hbm [resolvable:$true] %s39
      %s41 = sshll.u32 [#allocation5], 4
      %s42 = int_to_ptr.vmem [resolvable:$true] %s41
      %44 = dma.hbm_to_vmem [thread:$0]  %s40, 64, %s42, [#allocation6]
    $region21: #{tpu_custom_call.1} parent=1 // pred_fallthru
      _
    // Predicated region
    $region22: #{tpu_custom_call.1} parent=1 // pred_check
      _
    $region23: #{tpu_custom_call.1} parent=1 // pred_check_branch
      %46 = sbr.rel (0) target = $region25
    $region24: #{tpu_custom_call.1} parent=1 // pred_region
      _
    $region25: #{tpu_custom_call.1} parent=1 // pred_fallthru
      _
    // Predicated region
    $region26: #{tpu_custom_call.1} parent=1 // pred_check
      _
    $region27: #{tpu_custom_call.1} parent=1 // pred_check_branch
      %48 = sbr.rel (0) target = $region29
    $region28: #{tpu_custom_call.1} parent=1 // pred_region
      _
    $region29: #{tpu_custom_call.1} parent=1 // pred_fallthru
      _
    // Predicated region
    $region30: #{tpu_custom_call.1} parent=1 // pred_check
      _
    $region31: #{tpu_custom_call.1} parent=1 // pred_check_branch
      %50 = sbr.rel (0) target = $region33
    $region32: #{tpu_custom_call.1} parent=1 // pred_region
      %52 = dma.done [#allocation3], 128
    $region33: #{tpu_custom_call.1} parent=1 // pred_fallthru
      _
    // Predicated region
    $region34: #{tpu_custom_call.1} parent=1 // pred_check
      _
    $region35: #{tpu_custom_call.1} parent=1 // pred_check_branch
      %54 = sbr.rel (0) target = $region37
    $region36: #{tpu_custom_call.1} parent=1 // pred_region
      %56 = dma.done [#allocation6], 64
    $region37: #{tpu_custom_call.1} parent=1 // pred_fallthru
      _
    %v58 = vld [vmem:[#allocation5] sm:$0x1]
    %v59 = vld [vmem:[#allocation5 + $0x1] sm:$0x1]
    %v60 = vld [vmem:[#allocation5 + $0x2] sm:$0x1]
    %v61 = vld [vmem:[#allocation5 + $0x3] sm:$0x1]
    %v62 = vld [vmem:[%s0] sm:$0xf]
    %v63 = vld [vmem:[%s0 + $0x4] sm:$0xf]
    %v64 = vld [vmem:[%s0 + $0x8] sm:$0xf]
    %v65 = vld [vmem:[%s0 + $0xc] sm:$0xf]
    %v66 = vld [vmem:[%s0 + $0x10] sm:$0xf]
    %v67 = vld [vmem:[%s0 + $0x14] sm:$0xf]
    %v68 = vld [vmem:[%s0 + $0x18] sm:$0xf]
    %v69 = vld [vmem:[%s0 + $0x1c] sm:$0xf]
    %v70 = vld [vmem:[#allocation2] sm:$0xf]
    %v71 = vld [vmem:[#allocation2 + $0x4] sm:$0xf]
    %v72 = vperm.slane %v58, 0
    %v81 = vunpack.c.l.b16 %v62
    %v82 = vunpack.c.l.b16 %v63
    %v83 = vunpack.c.l.b16 %v64
    %v84 = vunpack.c.l.b16 %v65
    %v85 = vunpack.c.l.b16 %v66
    %v86 = vunpack.c.l.b16 %v67
    %v87 = vunpack.c.l.b16 %v68
    %v88 = vunpack.c.l.b16 %v69
    %v89 = vpack.c.b16 %v82, %v81
    %v90 = vpack.c.b16 %v84, %v83
    %v91 = vpack.c.b16 %v86, %v85
    %v92 = vpack.c.b16 %v88, %v87
    %v95 = vunpack.c.l.b16 %v70
    %v96 = vunpack.c.l.b16 %v71
    %v97 = vpack.c.b16 %v96, %v95
    %vm99 = vcmask 130048
    %v101 = vsel %vm99, %v89, 0
    %v104 = vsel %vm99, %v90, 0
    %v107 = vsel %vm99, %v91, 0
    %v110 = vsel %vm99, %v92, 0
    %112 = vmatpush.bf16.msra.mxu0 0
    %113 = vmatpush.bf16.msra.mxu0 0
    %114 = vmatpush.bf16.msra.mxu0 0
    %115 = vmatpush.bf16.msra.mxu0 0
    %116 = vmatpush.bf16.msra.mxu0 0
    %117 = vmatpush.bf16.msra.mxu0 0
    %118 = vmatpush.bf16.msra.mxu0 0
    %119 = vmatpush.bf16.msra.mxu0 %v97
    %120 = vmatmul.bf16.gmra.mxu0 %v101
    %v121 = vpop.f32.mrf.mxu0
    %v122 = vadd.f32 %v72, %v121
    %v123 = vpop.f32.mrf.mxu0
    %v124 = vadd.f32 %v72, %v123
    %125 = vmatmul.bf16.gmra.mxu0 %v104
    %v126 = vpop.f32.mrf.mxu0
    %v127 = vadd.f32 %v72, %v126
    %v128 = vpop.f32.mrf.mxu0
    %v129 = vadd.f32 %v72, %v128
    %130 = vmatmul.bf16.gmra.mxu0 %v107
    %v131 = vpop.f32.mrf.mxu0
    %v132 = vadd.f32 %v72, %v131
    %v133 = vpop.f32.mrf.mxu0
    %v134 = vadd.f32 %v72, %v133
    %135 = vmatmul.bf16.gmra.mxu0 %v110
    %v136 = vpop.f32.mrf.mxu0
    %v137 = vadd.f32 %v72, %v136
    %v138 = vpop.f32.mrf.mxu0
    %v139 = vadd.f32 %v72, %v138
    %140 = vdwg.mxu0
    %v141 = vld [vmem:[%s3] sm:$0xf]
    %v142 = vld [vmem:[%s3 + $0x4] sm:$0xf]
    %v143 = vld [vmem:[%s3 + $0x8] sm:$0xf]
    %v144 = vld [vmem:[%s3 + $0xc] sm:$0xf]
    %v145 = vld [vmem:[%s1] sm:$0xff]
    %v146 = vld [vmem:[%s1 + $0x8] sm:$0xff]
    %v147 = vld [vmem:[%s1 + $0x10] sm:$0xff]
    %v148 = vpack.c.bf16 %v145, %v145
    %v153 = vunpack.c.l.b16 %v141
    %v154 = vunpack.c.l.b16 %v142
    %v155 = vunpack.c.l.b16 %v143
    %v156 = vunpack.c.l.b16 %v144
    %v157 = vpack.c.b16 %v154, %v153
    %v158 = vpack.c.b16 %v156, %v155
    %vm161 = vcmask 261120
    %v163 = vsel %vm161, %v148, 0
    %165 = vmatpush.bf16.msra.mxu0 0
    %166 = vmatpush.bf16.msra.mxu0 0
    %167 = vmatpush.bf16.msra.mxu0 0
    %168 = vmatpush.bf16.msra.mxu0 0
    %169 = vmatpush.bf16.msra.mxu0 0
    %170 = vmatpush.bf16.msra.mxu0 0
    %171 = vmatpush.bf16.msra.mxu0 %v158
    %172 = vmatpush.bf16.msra.mxu0 %v157
    %173 = vmatmul.bf16.gmra.mxu0 %v163
    %v174 = vpop.f32.mrf.mxu0
    %v175 = vadd.f32 0.0, %v174
    %v176 = vpop.f32.mrf.mxu0
    %177 = vdwg.mxu0
    %v178 = vadd.f32 %v122, %v175
    %v179 = vxor.u32 %v178, 2147483648
    %v180 = vmul.f32 %v179, 1.442695
    %v181 = vpow.pop %v180
    %v182 = vadd.f32 %v181, 1.0
    %v183 = vrcp.pop %v182
    %v184 = vmul.f32 %v182, %v183
    %v185 = vsub.f32 1.0, %v184
    %v186 = vmul.f32 %v183, %v185
    %v187 = vadd.f32 %v183, %v186
    %vm188 = vweird.f32 %v182
    %vm189 = vweird.f32 %v183
    %vm190 = vmor %vm188, %vm189
    %v191 = vsel %vm190, %v183, %v187
    %v192 = vand.u32 2147483647, %v182
    %vm193 = vcmp.eq.f32.partialorder %v192, 8.507059e+37
    %v194 = vand.u32 %v182, 2147483648
    %v195 = vor.u32 1.1754944e-38, %v194
    %v196 = vsel %vm193, %v195, %v191
    %v197 = vmul.f32 1.0, %v196
    %v198 = vtanh.pop %v178
    %200 = vrot.lane.b32.xlu0 %v146, 32
    %v201 = vpop.permute.xlu0 %200
    %v203 = vmul.f32 %v197, %v201
    %205 = vrot.lane.b32.xlu0 %v198, 64
    %v206 = vpop.permute.xlu0 %205
    %v208 = vmul.f32 %v197, %v206
    %210 = vrot.lane.b32.xlu0 %v208, 32
    %v211 = vpop.permute.xlu0 %210
    %v213 = vadd.f32 %v203, %v211
    %v214 = vtanh.pop %v213
    %216 = vrot.lane.b32.xlu0 %v214, 64
    %v217 = vpop.permute.xlu0 %216
    %v219 = vmul.f32 %v197, %v217
    %v220 = vpack.c.bf16 %v219, %v219
    %222 = vrot.lane.b32.xlu0 %v220, 32
    %v223 = vpop.permute.xlu0 %222
    %v225 = vsel %vm161, %v223, 0
    %227 = vmatpush.bf16.msra.mxu0 0
    %228 = vmatpush.bf16.msra.mxu0 0
    %229 = vmatpush.bf16.msra.mxu0 0
    %230 = vmatpush.bf16.msra.mxu0 0
    %231 = vmatpush.bf16.msra.mxu0 0
    %232 = vmatpush.bf16.msra.mxu0 0
    %233 = vmatpush.bf16.msra.mxu0 %v158
    %234 = vmatpush.bf16.msra.mxu0 %v157
    %235 = vmatmul.bf16.gmra.mxu0 %v225
    %v236 = vpop.f32.mrf.mxu0
    %v237 = vadd.f32 0.0, %v236
    %v238 = vpop.f32.mrf.mxu0
    %239 = vdwg.mxu0
    %v240 = vadd.f32 %v124, %v237
    %v241 = vxor.u32 %v240, 2147483648
    %v242 = vmul.f32 %v241, 1.442695
    %v243 = vpow.pop %v242
    %v244 = vadd.f32 %v243, 1.0
    %v245 = vrcp.pop %v244
    %v246 = vmul.f32 %v244, %v245
    %v247 = vsub.f32 1.0, %v246
    %v248 = vmul.f32 %v245, %v247
    %v249 = vadd.f32 %v245, %v248
    %vm250 = vweird.f32 %v244
    %vm251 = vweird.f32 %v245
    %vm252 = vmor %vm250, %vm251
    %v253 = vsel %vm252, %v245, %v249
    %v254 = vand.u32 2147483647, %v244
    %vm255 = vcmp.eq.f32.partialorder %v254, 8.507059e+37
    %v256 = vand.u32 %v244, 2147483648
    %v257 = vor.u32 1.1754944e-38, %v256
    %v258 = vsel %vm255, %v257, %v253
    %v259 = vmul.f32 1.0, %v258
    %v260 = vtanh.pop %v240
    %v261 = vmul.f32 %v259, %v213
    %263 = vrot.lane.b32.xlu0 %v260, 64
    %v264 = vpop.permute.xlu0 %263
    %v266 = vmul.f32 %v259, %v264
    %268 = vrot.lane.b32.xlu0 %v266, 32
    %v269 = vpop.permute.xlu0 %268
    %v271 = vadd.f32 %v261, %v269
    %v272 = vtanh.pop %v271
    %274 = vrot.lane.b32.xlu0 %v272, 64
    %v275 = vpop.permute.xlu0 %274
    %v277 = vmul.f32 %v259, %v275
    %v278 = vpack.c.bf16 %v277, %v277
    %280 = vrot.lane.b32.xlu0 %v278, 32
    %v281 = vpop.permute.xlu0 %280
    %v283 = vsel %vm161, %v281, 0
    %285 = vmatpush.bf16.msra.mxu0 0
    %286 = vmatpush.bf16.msra.mxu0 0
    %287 = vmatpush.bf16.msra.mxu0 0
    %288 = vmatpush.bf16.msra.mxu0 0
    %289 = vmatpush.bf16.msra.mxu0 0
    %290 = vmatpush.bf16.msra.mxu0 0
    %291 = vmatpush.bf16.msra.mxu0 %v158
    %292 = vmatpush.bf16.msra.mxu0 %v157
    %293 = vmatmul.bf16.gmra.mxu0 %v283
    %v294 = vpop.f32.mrf.mxu0
    %v295 = vadd.f32 0.0, %v294
    %v296 = vpop.f32.mrf.mxu0
    %297 = vdwg.mxu0
    %v298 = vadd.f32 %v127, %v295
    %v299 = vxor.u32 %v298, 2147483648
    %v300 = vmul.f32 %v299, 1.442695
    %v301 = vpow.pop %v300
    %v302 = vadd.f32 %v301, 1.0
    %v303 = vrcp.pop %v302
    %v304 = vmul.f32 %v302, %v303
    %v305 = vsub.f32 1.0, %v304
    %v306 = vmul.f32 %v303, %v305
    %v307 = vadd.f32 %v303, %v306
    %vm308 = vweird.f32 %v302
    %vm309 = vweird.f32 %v303
    %vm310 = vmor %vm308, %vm309
    %v311 = vsel %vm310, %v303, %v307
    %v312 = vand.u32 2147483647, %v302
    %vm313 = vcmp.eq.f32.partialorder %v312, 8.507059e+37
    %v314 = vand.u32 %v302, 2147483648
    %v315 = vor.u32 1.1754944e-38, %v314
    %v316 = vsel %vm313, %v315, %v311
    %v317 = vmul.f32 1.0, %v316
    %v318 = vtanh.pop %v298
    %v319 = vmul.f32 %v317, %v271
    %321 = vrot.lane.b32.xlu0 %v318, 64
    %v322 = vpop.permute.xlu0 %321
    %v324 = vmul.f32 %v317, %v322
    %326 = vrot.lane.b32.xlu0 %v324, 32
    %v327 = vpop.permute.xlu0 %326
    %v329 = vadd.f32 %v319, %v327
    %v330 = vtanh.pop %v329
    %332 = vrot.lane.b32.xlu0 %v330, 64
    %v333 = vpop.permute.xlu0 %332
    %v335 = vmul.f32 %v317, %v333
    %v336 = vpack.c.bf16 %v335, %v335
    %338 = vrot.lane.b32.xlu0 %v336, 32
    %v339 = vpop.permute.xlu0 %338
    %v341 = vsel %vm161, %v339, 0
    %343 = vmatpush.bf16.msra.mxu0 0
    %344 = vmatpush.bf16.msra.mxu0 0
    %345 = vmatpush.bf16.msra.mxu0 0
    %346 = vmatpush.bf16.msra.mxu0 0
    %347 = vmatpush.bf16.msra.mxu0 0
    %348 = vmatpush.bf16.msra.mxu0 0
    %349 = vmatpush.bf16.msra.mxu0 %v158
    %350 = vmatpush.bf16.msra.mxu0 %v157
    %351 = vmatmul.bf16.gmra.mxu0 %v341
    %v352 = vpop.f32.mrf.mxu0
    %v353 = vadd.f32 0.0, %v352
    %v354 = vpop.f32.mrf.mxu0
    %355 = vdwg.mxu0
    %v356 = vadd.f32 %v129, %v353
    %v357 = vxor.u32 %v356, 2147483648
    %v358 = vmul.f32 %v357, 1.442695
    %v359 = vpow.pop %v358
    %v360 = vadd.f32 %v359, 1.0
    %v361 = vrcp.pop %v360
    %v362 = vmul.f32 %v360, %v361
    %v363 = vsub.f32 1.0, %v362
    %v364 = vmul.f32 %v361, %v363
    %v365 = vadd.f32 %v361, %v364
    %vm366 = vweird.f32 %v360
    %vm367 = vweird.f32 %v361
    %vm368 = vmor %vm366, %vm367
    %v369 = vsel %vm368, %v361, %v365
    %v370 = vand.u32 2147483647, %v360
    %vm371 = vcmp.eq.f32.partialorder %v370, 8.507059e+37
    %v372 = vand.u32 %v360, 2147483648
    %v373 = vor.u32 1.1754944e-38, %v372
    %v374 = vsel %vm371, %v373, %v369
    %v375 = vmul.f32 1.0, %v374
    %v376 = vtanh.pop %v356
    %v377 = vmul.f32 %v375, %v329
    %379 = vrot.lane.b32.xlu0 %v376, 64
    %v380 = vpop.permute.xlu0 %379
    %v382 = vmul.f32 %v375, %v380
    %384 = vrot.lane.b32.xlu0 %v382, 32
    %v385 = vpop.permute.xlu0 %384
    %v387 = vadd.f32 %v377, %v385
    %v388 = vtanh.pop %v387
    %390 = vrot.lane.b32.xlu0 %v388, 64
    %v391 = vpop.permute.xlu0 %390
    %v393 = vmul.f32 %v375, %v391
    %v394 = vpack.c.bf16 %v393, %v393
    %396 = vrot.lane.b32.xlu0 %v394, 32
    %v397 = vpop.permute.xlu0 %396
    %v399 = vsel %vm161, %v397, 0
    %401 = vmatpush.bf16.msra.mxu0 0
    %402 = vmatpush.bf16.msra.mxu0 0
    %403 = vmatpush.bf16.msra.mxu0 0
    %404 = vmatpush.bf16.msra.mxu0 0
    %405 = vmatpush.bf16.msra.mxu0 0
    %406 = vmatpush.bf16.msra.mxu0 0
    %407 = vmatpush.bf16.msra.mxu0 %v158
    %408 = vmatpush.bf16.msra.mxu0 %v157
    %409 = vmatmul.bf16.gmra.mxu0 %v399
    %v410 = vpop.f32.mrf.mxu0
    %v411 = vadd.f32 0.0, %v410
    %v412 = vpop.f32.mrf.mxu0
    %413 = vdwg.mxu0
    %v414 = vadd.f32 %v132, %v411
    %v415 = vxor.u32 %v414, 2147483648
    %v416 = vmul.f32 %v415, 1.442695
    %v417 = vpow.pop %v416
    %v418 = vadd.f32 %v417, 1.0
    %v419 = vrcp.pop %v418
    %v420 = vmul.f32 %v418, %v419
    %v421 = vsub.f32 1.0, %v420
    %v422 = vmul.f32 %v419, %v421
    %v423 = vadd.f32 %v419, %v422
    %vm424 = vweird.f32 %v418
    %vm425 = vweird.f32 %v419
    %vm426 = vmor %vm424, %vm425
    %v427 = vsel %vm426, %v419, %v423
    %v428 = vand.u32 2147483647, %v418
    %vm429 = vcmp.eq.f32.partialorder %v428, 8.507059e+37
    %v430 = vand.u32 %v418, 2147483648
    %v431 = vor.u32 1.1754944e-38, %v430
    %v432 = vsel %vm429, %v431, %v427
    %v433 = vmul.f32 1.0, %v432
    %v434 = vtanh.pop %v414
    %v435 = vmul.f32 %v433, %v387
    %437 = vrot.lane.b32.xlu0 %v434, 64
    %v438 = vpop.permute.xlu0 %437
    %v440 = vmul.f32 %v433, %v438
    %442 = vrot.lane.b32.xlu0 %v440, 32
    %v443 = vpop.permute.xlu0 %442
    %v445 = vadd.f32 %v435, %v443
    %v446 = vtanh.pop %v445
    %448 = vrot.lane.b32.xlu0 %v446, 64
    %v449 = vpop.permute.xlu0 %448
    %v451 = vmul.f32 %v433, %v449
    %v452 = vpack.c.bf16 %v451, %v451
    %454 = vrot.lane.b32.xlu0 %v452, 32
    %v455 = vpop.permute.xlu0 %454
    %v457 = vsel %vm161, %v455, 0
    %459 = vmatpush.bf16.msra.mxu0 0
    %460 = vmatpush.bf16.msra.mxu0 0
    %461 = vmatpush.bf16.msra.mxu0 0
    %462 = vmatpush.bf16.msra.mxu0 0
    %463 = vmatpush.bf16.msra.mxu0 0
    %464 = vmatpush.bf16.msra.mxu0 0
    %465 = vmatpush.bf16.msra.mxu0 %v158
    %466 = vmatpush.bf16.msra.mxu0 %v157
    %467 = vmatmul.bf16.gmra.mxu0 %v457
    %v468 = vpop.f32.mrf.mxu0
    %v469 = vadd.f32 0.0, %v468
    %v470 = vpop.f32.mrf.mxu0
    %471 = vdwg.mxu0
    %v472 = vadd.f32 %v134, %v469
    %v473 = vxor.u32 %v472, 2147483648
    %v474 = vmul.f32 %v473, 1.442695
    %v475 = vpow.pop %v474
    %v476 = vadd.f32 %v475, 1.0
    %v477 = vrcp.pop %v476
    %v478 = vmul.f32 %v476, %v477
    %v479 = vsub.f32 1.0, %v478
    %v480 = vmul.f32 %v477, %v479
    %v481 = vadd.f32 %v477, %v480
    %vm482 = vweird.f32 %v476
    %vm483 = vweird.f32 %v477
    %vm484 = vmor %vm482, %vm483
    %v485 = vsel %vm484, %v477, %v481
    %v486 = vand.u32 2147483647, %v476
    %vm487 = vcmp.eq.f32.partialorder %v486, 8.507059e+37
    %v488 = vand.u32 %v476, 2147483648
    %v489 = vor.u32 1.1754944e-38, %v488
    %v490 = vsel %vm487, %v489, %v485
    %v491 = vmul.f32 1.0, %v490
    %v492 = vtanh.pop %v472
    %v493 = vmul.f32 %v491, %v445
    %495 = vrot.lane.b32.xlu0 %v492, 64
    %v496 = vpop.permute.xlu0 %495
    %v498 = vmul.f32 %v491, %v496
    %500 = vrot.lane.b32.xlu0 %v498, 32
    %v501 = vpop.permute.xlu0 %500
    %v503 = vadd.f32 %v493, %v501
    %v504 = vtanh.pop %v503
    %506 = vrot.lane.b32.xlu0 %v504, 64
    %v507 = vpop.permute.xlu0 %506
    %v509 = vmul.f32 %v491, %v507
    %v510 = vpack.c.bf16 %v509, %v509
    %512 = vrot.lane.b32.xlu0 %v510, 32
    %v513 = vpop.permute.xlu0 %512
    %v515 = vsel %vm161, %v513, 0
    %517 = vmatpush.bf16.msra.mxu0 0
    %518 = vmatpush.bf16.msra.mxu0 0
    %519 = vmatpush.bf16.msra.mxu0 0
    %520 = vmatpush.bf16.msra.mxu0 0
    %521 = vmatpush.bf16.msra.mxu0 0
    %522 = vmatpush.bf16.msra.mxu0 0
    %523 = vmatpush.bf16.msra.mxu0 %v158
    %524 = vmatpush.bf16.msra.mxu0 %v157
    %525 = vmatmul.bf16.gmra.mxu0 %v515
    %v526 = vpop.f32.mrf.mxu0
    %v527 = vadd.f32 0.0, %v526
    %v528 = vpop.f32.mrf.mxu0
    %529 = vdwg.mxu0
    %v530 = vadd.f32 %v137, %v527
    %v531 = vxor.u32 %v530, 2147483648
    %v532 = vmul.f32 %v531, 1.442695
    %v533 = vpow.pop %v532
    %v534 = vadd.f32 %v533, 1.0
    %v535 = vrcp.pop %v534
    %v536 = vmul.f32 %v534, %v535
    %v537 = vsub.f32 1.0, %v536
    %v538 = vmul.f32 %v535, %v537
    %v539 = vadd.f32 %v535, %v538
    %vm540 = vweird.f32 %v534
    %vm541 = vweird.f32 %v535
    %vm542 = vmor %vm540, %vm541
    %v543 = vsel %vm542, %v535, %v539
    %v544 = vand.u32 2147483647, %v534
    %vm545 = vcmp.eq.f32.partialorder %v544, 8.507059e+37
    %v546 = vand.u32 %v534, 2147483648
    %v547 = vor.u32 1.1754944e-38, %v546
    %v548 = vsel %vm545, %v547, %v543
    %v549 = vmul.f32 1.0, %v548
    %v550 = vtanh.pop %v530
    %v551 = vmul.f32 %v549, %v503
    %553 = vrot.lane.b32.xlu0 %v550, 64
    %v554 = vpop.permute.xlu0 %553
    %v556 = vmul.f32 %v549, %v554
    %558 = vrot.lane.b32.xlu0 %v556, 32
    %v559 = vpop.permute.xlu0 %558
    %v561 = vadd.f32 %v551, %v559
    %v562 = vtanh.pop %v561
    %564 = vrot.lane.b32.xlu0 %v562, 64
    %v565 = vpop.permute.xlu0 %564
    %v567 = vmul.f32 %v549, %v565
    %v568 = vpack.c.bf16 %v567, %v567
    %570 = vrot.lane.b32.xlu0 %v568, 32
    %v571 = vpop.permute.xlu0 %570
    %v573 = vsel %vm161, %v571, 0
    %575 = vmatpush.bf16.msra.mxu0 0
    %576 = vmatpush.bf16.msra.mxu0 0
    %577 = vmatpush.bf16.msra.mxu0 0
    %578 = vmatpush.bf16.msra.mxu0 0
    %579 = vmatpush.bf16.msra.mxu0 0
    %580 = vmatpush.bf16.msra.mxu0 0
    %581 = vmatpush.bf16.msra.mxu0 %v158
    %582 = vmatpush.bf16.msra.mxu0 %v157
    %583 = vmatmul.bf16.gmra.mxu0 %v573
    %v584 = vpop.f32.mrf.mxu0
    %v585 = vadd.f32 0.0, %v584
    %v586 = vpop.f32.mrf.mxu0
    %587 = vdwg.mxu0
    %v588 = vadd.f32 %v139, %v585
    %v589 = vxor.u32 %v588, 2147483648
    %v590 = vmul.f32 %v589, 1.442695
    %v591 = vpow.pop %v590
    %v592 = vadd.f32 %v591, 1.0
    %v593 = vrcp.pop %v592
    %v594 = vmul.f32 %v592, %v593
    %v595 = vsub.f32 1.0, %v594
    %v596 = vmul.f32 %v593, %v595
    %v597 = vadd.f32 %v593, %v596
    %vm598 = vweird.f32 %v592
    %vm599 = vweird.f32 %v593
    %vm600 = vmor %vm598, %vm599
    %v601 = vsel %vm600, %v593, %v597
    %v602 = vand.u32 2147483647, %v592
    %vm603 = vcmp.eq.f32.partialorder %v602, 8.507059e+37
    %v604 = vand.u32 %v592, 2147483648
    %v605 = vor.u32 1.1754944e-38, %v604
    %v606 = vsel %vm603, %v605, %v601
    %v607 = vmul.f32 1.0, %v606
    %v608 = vtanh.pop %v588
    %v609 = vmul.f32 %v607, %v561
    %611 = vrot.lane.b32.xlu0 %v608, 64
    %v612 = vpop.permute.xlu0 %611
    %v614 = vmul.f32 %v607, %v612
    %616 = vrot.lane.b32.xlu0 %v614, 32
    %v617 = vpop.permute.xlu0 %616
    %v619 = vadd.f32 %v609, %v617
    %v620 = vtanh.pop %v619
    %622 = vrot.lane.b32.xlu0 %v620, 64
    %v623 = vpop.permute.xlu0 %622
    %v625 = vmul.f32 %v607, %v623
    %v626 = vld [vmem:[%s5] sm:$0xf]
    %v627 = vld [vmem:[%s5 + $0x4] sm:$0xf]
    %v628 = vld [vmem:[%s5 + $0x8] sm:$0xf]
    %v629 = vld [vmem:[%s5 + $0xc] sm:$0xf]
    %v630 = vpack.c.bf16 %v625, %v625
    %v631 = vperm.slane %v59, 0
    %633 = vrot.lane.b32.xlu0 %v630, 32
    %v634 = vpop.permute.xlu0 %633
    %v639 = vunpack.c.l.b16 %v626
    %v640 = vunpack.c.l.b16 %v627
    %v641 = vunpack.c.l.b16 %v628
    %v642 = vunpack.c.l.b16 %v629
    %v643 = vpack.c.b16 %v640, %v639
    %v644 = vpack.c.b16 %v642, %v641
    %v648 = vsel %vm161, %v634, 0
    %650 = vmatpush.bf16.msra.mxu0 0
    %651 = vmatpush.bf16.msra.mxu0 0
    %652 = vmatpush.bf16.msra.mxu0 0
    %653 = vmatpush.bf16.msra.mxu0 0
    %654 = vmatpush.bf16.msra.mxu0 0
    %655 = vmatpush.bf16.msra.mxu0 0
    %656 = vmatpush.bf16.msra.mxu0 %v644
    %657 = vmatpush.bf16.msra.mxu0 %v643
    %658 = vmatmul.bf16.gmra.mxu0 %v648
    %v659 = vpop.f32.mrf.mxu0
    %v660 = vadd.f32 %v631, %v659
    %v661 = vpop.f32.mrf.mxu0
    %662 = vdwg.mxu0
    %v663 = vmul.f32 %v660, 0.5
    %v664 = vmul.f32 %v663, 1.442695
    %v665 = vpow.pop %v664
    %667 = vrot.lane.b32.xlu0 %v147, 32
    %v668 = vpop.permute.xlu0 %667
    %v670 = vmul.f32 %v665, %v668
    %672 = vrot.lane.b32.xlu0 %v670, 96
    %v673 = vpop.permute.xlu0 %672
    %v675 = vadd.f32 %v660, %v673
    %v676 = vsel %vm161, %v675, -inf
    %677 = vmax.xlane.f32.xlu0 %v676
    %v678 = vpop.xlane.xlu0 %677
    %v679 = vsub.f32 %v675, %v678
    %v680 = vmul.f32 %v679, 1.442695
    %v681 = vpow.pop %v680
    %v682 = vsel %vm161, %v681, 0.0
    %683 = vadd.xlane.f32.xlu0 %v682
    %v684 = vpop.xlane.xlu0 %683
    %v685 = vrcp.pop %v684
    %v686 = vmul.f32 %v684, %v685
    %v687 = vsub.f32 1.0, %v686
    %v688 = vmul.f32 %v685, %v687
    %v689 = vadd.f32 %v685, %v688
    %vm690 = vweird.f32 %v684
    %vm691 = vweird.f32 %v685
    %vm692 = vmor %vm690, %vm691
    %v693 = vsel %vm692, %v685, %v689
    %v694 = vand.u32 2147483647, %v684
    %vm695 = vcmp.eq.f32.partialorder %v694, 8.507059e+37
    %v696 = vand.u32 %v684, 2147483648
    %v697 = vor.u32 1.1754944e-38, %v696
    %v698 = vsel %vm695, %v697, %v693
    %v699 = vmul.f32 %v681, %v698
    %v700 = vpack.c.bf16 %v699, %v699
    %v701 = vperm.slane %v60, 0
    %702 = vrot.lane.b32.xlu0 %v643, 64
    %v703 = vpop.permute.xlu0 %702
    %704 = vrot.lane.b32.xlu0 %v644, 64
    %v705 = vpop.permute.xlu0 %704
    %v709 = vsel %vm161, %v700, 0
    %711 = vmatpush.bf16.msra.mxu0 0
    %712 = vmatpush.bf16.msra.mxu0 0
    %713 = vmatpush.bf16.msra.mxu0 0
    %714 = vmatpush.bf16.msra.mxu0 0
    %715 = vmatpush.bf16.msra.mxu0 0
    %716 = vmatpush.bf16.msra.mxu0 0
    %717 = vmatpush.bf16.msra.mxu0 %v705
    %718 = vmatpush.bf16.msra.mxu0 %v703
    %719 = vmatmul.bf16.gmra.mxu0 %v709
    %v720 = vpop.f32.mrf.mxu0
    %v721 = vadd.f32 %v701, %v720
    %v722 = vpop.f32.mrf.mxu0
    %723 = vdwg.mxu0
    %v724 = vtanh.pop %v721
    %v725 = vpack.c.bf16 %v724, %v724
    %v726 = vld [vmem:[%s6] sm:$0xf]
    %v727 = vld [vmem:[%s6 + $0x4] sm:$0xf]
    %v728 = vperm.slane %v61, 0
    %v731 = vunpack.c.l.b16 %v726
    %v732 = vunpack.c.l.b16 %v727
    %v733 = vpack.c.b16 %v732, %v731
    %v736 = vsel %vm99, %v725, 0
    %738 = vmatpush.bf16.msra.mxu0 0
    %739 = vmatpush.bf16.msra.mxu0 0
    %740 = vmatpush.bf16.msra.mxu0 0
    %741 = vmatpush.bf16.msra.mxu0 0
    %742 = vmatpush.bf16.msra.mxu0 0
    %743 = vmatpush.bf16.msra.mxu0 0
    %744 = vmatpush.bf16.msra.mxu0 0
    %745 = vmatpush.bf16.msra.mxu0 %v733
    %746 = vmatmul.bf16.gmra.mxu0 %v736
    %v747 = vpop.f32.mrf.mxu0
    %v748 = vadd.f32 %v728, %v747
    %v749 = vpop.f32.mrf.mxu0
    %750 = vdwg.mxu0
    %752 = vrot.lane.b32.xlu0 %v748, 32
    %v753 = vpop.permute.xlu0 %752
    %v755 = vsel %vm161, %v699, %v753
    %vm756 = vcmask 326656
    %v757 = vsel %vm756, %v755, 0.0
    %758 = vst [vmem:[#allocation7] sm:$0xff] %v757
    // Predicated region
    $region38: #{tpu_custom_call.1} parent=1 // pred_check
      _
    $region39: #{tpu_custom_call.1} parent=1 // pred_check_branch
      %760 = sbr.rel (0) target = $region41
    $region40: #{tpu_custom_call.1} parent=1 // pred_region
      %762 = vsyncadd [#allocation4], 0
      %s764 = sshll.u32 [#allocation7], 4
      %s765 = int_to_ptr.vmem [resolvable:$true] %s764
      %s766 = sshll.u32 %s7, 4
      %s767 = int_to_ptr.hbm [resolvable:$true] %s766
      %769 = dma.vmem_to_hbm [thread:$0]  %s765, 128, %s767, [#allocation4]
    $region41: #{tpu_custom_call.1} parent=1 // pred_fallthru
      _
    // Predicated region
    $region42: #{tpu_custom_call.1} parent=1 // pred_check
      _
    $region43: #{tpu_custom_call.1} parent=1 // pred_check_branch
      %771 = sbr.rel (0) target = $region45
    $region44: #{tpu_custom_call.1} parent=1 // pred_region
      %773 = dma.done [#allocation4], 128
    $region45: #{tpu_custom_call.1} parent=1 // pred_fallthru
      _
    %774 = vsyncpa [#allocation3], 1
    %775 = vsyncpa [#allocation6], 1
    %776 = vsyncpa [#allocation4], 1

</llo_original>
